<compile_context>
chip_gen: v7x
topology: tpu7x:2x2x1
jax: 0.10.0
libtpu: 0.0.40
codegen_flags: <defaults>
</compile_context>

<pallas_src>
import jax
import jax.numpy as jnp
from jax import lax
from jax.experimental import pallas as pl
from jax.experimental.pallas import tpu as pltpu


def cnn_feature_kernel(x_ref, hc_ref, m1_ref, c1_ref, m2_ref, c2_ref,
                       v3_ref, vh_ref, b_ref, o_ref):
    # x_ref : (TB, W*F)   batch on sublanes, natural layout
    # hc_ref: (TB, HF)    kept f32 (feeds the f32 VPU epilogue only)
    # m1_ref: (W*F, H1*C1)   compute_dtype (bf16 by default)
    # m2_ref: (H1*C1, H2*C2) compute_dtype
    # c1/c2/v3/vh/b: f32 row vectors
    cdt = m1_ref.dtype
    x = x_ref[...].astype(cdt)
    a1 = jnp.dot(x, m1_ref[...], preferred_element_type=jnp.float32) + c1_ref[...]
    a1 = jnp.maximum(a1, 0.0)
    a2 = jnp.dot(a1.astype(cdt), m2_ref[...],
                 preferred_element_type=jnp.float32) + c2_ref[...]
    a2 = jnp.maximum(a2, 0.0)
    # Epilogue off the MXU: VPU multiply + lane reduction (XLU), all f32.
    out = (jnp.sum(a2 * v3_ref[...], axis=-1, keepdims=True)
           + jnp.sum(hc_ref[...] * vh_ref[...], axis=-1, keepdims=True)
           + b_ref[...])
    o_ref[...] = out                                    # (TB, 1)


def _round_up(n, m):
    return (n + m - 1) // m * m


def _fold_params(params, W, F, HF, compute_dtype):
    """Fold conv / eval-mode BN / bias / avg-pool / flatten / linear into two
    dense affine maps + a final row vector (tiny, batch-independent)."""
    eps = 1e-5
    K1, C1 = 4, 8
    K2, C2 = 3, 14
    H1 = W - K1 + 1
    H1p = (H1 - 2) // 2 + 1
    H2 = H1p - K2 + 1
    H3 = (H2 - 2) // 2 + 1

    f32 = jnp.float32
    w1 = params["w1"].astype(f32)                      # (C1, 1, K1, F)
    b1 = params["b1"].astype(f32)
    w2 = params["w2"].astype(f32)                      # (C2, C1, K2, 1)
    b2 = params["b2"].astype(f32)
    wl = params["wl"].astype(f32)                      # (1, C2*H3 + HF)
    bl = params["bl"].astype(f32)

    s1 = params["bn1_gamma"].astype(f32) / jnp.sqrt(params["bn1_var"].astype(f32) + eps)
    t1 = (b1 - params["bn1_mean"].astype(f32)) * s1 + params["bn1_beta"].astype(f32)
    s2 = params["bn2_gamma"].astype(f32) / jnp.sqrt(params["bn2_var"].astype(f32) + eps)
    t2 = (b2 - params["bn2_mean"].astype(f32)) * s2 + params["bn2_beta"].astype(f32)

    # --- M1: conv1 (+ BN1 scale) as block-Toeplitz (H1*C1, W*F); rows (h1,c1) ---
    W1 = w1[:, 0, :, :]                                       # (C1, K1, F)
    kh1 = jnp.arange(W)[None, :] - jnp.arange(H1)[:, None]    # (H1, W)
    valid1 = (kh1 >= 0) & (kh1 < K1)
    W1g = W1[:, jnp.clip(kh1, 0, K1 - 1), :]                  # (C1, H1, W, F)
    W1g = jnp.where(valid1[None, :, :, None], W1g, 0.0)
    M1 = (s1[:, None, None, None] * W1g).transpose(1, 0, 2, 3).reshape(H1 * C1, W * F)
    c1 = jnp.tile(t1, H1).reshape(1, H1 * C1)                 # bias + BN shift

    # --- M2: avgpool1 + conv2 (+ BN2 scale) as (H2*C2, H1*C1) ---
    W2 = w2[:, :, :, 0]                                       # (C2, C1, K2)
    hp = jnp.arange(H1) // 2                                  # pool1 row of conv1 row
    kh2 = hp[None, :] - jnp.arange(H2)[:, None]               # (H2, H1)
    valid2 = (kh2 >= 0) & (kh2 < K2) & (jnp.arange(H1)[None, :] < 2 * H1p)
    W2g = W2[:, :, jnp.clip(kh2, 0, K2 - 1)]                  # (C2, C1, H2, H1)
    W2g = jnp.where(valid2[None, None, :, :], W2g, 0.0)
    M2 = 0.5 * (s2[:, None, None, None] * W2g).transpose(2, 0, 3, 1).reshape(H2 * C2, H1 * C1)
    c2 = jnp.tile(t2, H2).reshape(1, H2 * C2)

    # --- v3: avgpool2 + flatten (channel-major, matching torch .view) + linear ---
    wl_img = wl[0, :C2 * H3].reshape(C2, H3)                  # [c2, h3]
    h3 = jnp.arange(H2) // 2
    valid3 = jnp.arange(H2) < 2 * H3
    v3 = jnp.where(valid3[:, None], 0.5 * wl_img[:, h3].T, 0.0).reshape(1, H2 * C2)

    vh = wl[0:1, C2 * H3:]                                    # (1, HF)
    b = bl.reshape(1, 1)

    # Transpose for batch-on-sublanes orientation; big matrices in compute dtype.
    m1t = M1.T.astype(compute_dtype)                          # (W*F, H1*C1)
    m2t = M2.T.astype(compute_dtype)                          # (H1*C1, H2*C2)
    return m1t, c1, m2t, c2, v3, vh, b


def model_cnn_feature_forward(x, hc, params, *, block_b=2048,
                              compute_dtype=jnp.bfloat16):
    """x: (B, window_size, ori_feature_num); hc: (B, HF) -> (B, 1) f32."""
    B, W, F = x.shape
    HF = hc.shape[1]
    consts = _fold_params(params, W, F, HF, compute_dtype)

    x_flat = x.reshape(B, W * F).astype(jnp.float32)   # row-major view, no copy
    hc = hc.astype(jnp.float32)

    # Batch tile selection: amortize per-step overhead, give both v7x TensorCores
    # work (>=2 steps when there is enough batch), minimize ragged-edge waste.
    nb_min = pl.cdiv(B, block_b)
    if B >= 256:
        nb_min = max(nb_min, 2)
    TB = _round_up(pl.cdiv(B, nb_min), 8)
    nb = pl.cdiv(B, TB)                                 # Pallas masks the overhang

    const_specs = [pl.BlockSpec(c.shape, lambda i: (0, 0)) for c in consts]

    out = pl.pallas_call(
        cnn_feature_kernel,
        grid=(nb,),
        in_specs=[pl.BlockSpec((TB, W * F), lambda i: (i, 0)),
                  pl.BlockSpec((TB, HF), lambda i: (i, 0)),
                  *const_specs],
        out_specs=pl.BlockSpec((TB, 1), lambda i: (i, 0)),
        out_shape=jax.ShapeDtypeStruct((B, 1), jnp.float32),
        compiler_params=pltpu.CompilerParams(
            dimension_semantics=("parallel",),
            vmem_limit_bytes=32 * 1024 * 1024),         # headroom for TB~2048 on v5e
    )(x_flat, hc, *consts)
    return out


def reference_forward(x, hc, params):
    """Pure-JAX (XLA) replica of the PyTorch forward (eval-mode BN), for checks."""
    eps = 1e-5
    B = x.shape[0]
    hp = lax.Precision.HIGHEST
    xi = x[:, None, :, :]                                         # NCHW
    dn = ("NCHW", "OIHW", "NCHW")

    def bn(y, g, b, m, v):
        return (y - m[None, :, None, None]) / jnp.sqrt(v[None, :, None, None] + eps) \
               * g[None, :, None, None] + b[None, :, None, None]

    y = lax.conv_general_dilated(xi, params["w1"], (1, 1), "VALID",
                                 dimension_numbers=dn, precision=hp)
    y = y + params["b1"][None, :, None, None]
    y = jnp.maximum(bn(y, params["bn1_gamma"], params["bn1_beta"],
                       params["bn1_mean"], params["bn1_var"]), 0.0)
    y = lax.reduce_window(y, 0.0, lax.add, (1, 1, 2, 1), (1, 1, 2, 2), "VALID") / 2.0

    y = lax.conv_general_dilated(y, params["w2"], (1, 1), "VALID",
                                 dimension_numbers=dn, precision=hp)
    y = y + params["b2"][None, :, None, None]
    y = jnp.maximum(bn(y, params["bn2_gamma"], params["bn2_beta"],
                       params["bn2_mean"], params["bn2_var"]), 0.0)
    y = lax.reduce_window(y, 0.0, lax.add, (1, 1, 2, 1), (1, 1, 2, 2), "VALID") / 2.0

    flat = y.reshape(B, -1)
    comb = jnp.concatenate([flat, hc], axis=1)
    return jnp.dot(comb, params["wl"].T, precision=hp) + params["bl"][None, :]


if __name__ == "__main__":
    window_size, ori_feature_num = 22, 8
    handcrafted_feature_num = 34
    lin_in = 14 * (window_size - 10) // 4 + handcrafted_feature_num   # 76

    key = jax.random.PRNGKey(0)
    ks = jax.random.split(key, 20)

    params = {
        "w1": 0.1 * jax.random.normal(ks[2], (8, 1, 4, ori_feature_num), jnp.float32),
        "b1": 0.1 * jax.random.normal(ks[3], (8,), jnp.float32),
        "bn1_gamma": 1.0 + 0.1 * jax.random.normal(ks[4], (8,), jnp.float32),
        "bn1_beta": 0.1 * jax.random.normal(ks[5], (8,), jnp.float32),
        "bn1_mean": 0.1 * jax.random.normal(ks[6], (8,), jnp.float32),
        "bn1_var": 1.0 + 0.1 * jnp.abs(jax.random.normal(ks[7], (8,), jnp.float32)),
        "w2": 0.1 * jax.random.normal(ks[8], (14, 8, 3, 1), jnp.float32),
        "b2": 0.1 * jax.random.normal(ks[9], (14,), jnp.float32),
        "bn2_gamma": 1.0 + 0.1 * jax.random.normal(ks[10], (14,), jnp.float32),
        "bn2_beta": 0.1 * jax.random.normal(ks[11], (14,), jnp.float32),
        "bn2_mean": 0.1 * jax.random.normal(ks[12], (14,), jnp.float32),
        "bn2_var": 1.0 + 0.1 * jnp.abs(jax.random.normal(ks[13], (14,), jnp.float32)),
        "wl": 0.1 * jax.random.normal(ks[14], (1, lin_in), jnp.float32),
        "bl": 0.1 * jax.random.normal(ks[15], (1,), jnp.float32),
    }

    fwd = jax.jit(model_cnn_feature_forward,
                  static_argnames=("block_b", "compute_dtype"))

    def check(B, xk, hk, dtype, tol, tag):
        x = jax.random.normal(xk, (B, window_size, ori_feature_num), jnp.float32)
        hc = jax.random.normal(hk, (B, handcrafted_feature_num), jnp.float32)
        out = jax.block_until_ready(fwd(x, hc, params, compute_dtype=dtype))
        assert out.shape == (B, 1), out.shape
        ref = jax.block_until_ready(reference_forward(x, hc, params))
        err = float(jnp.max(jnp.abs(out - ref)))
        if err > tol:
            raise AssertionError(f"{tag}: max abs err {err} > {tol}")

    # f32 path: proves the conv/BN/pool/linear refold is (numerically) exact.
    check(2, ks[0], ks[1], jnp.float32, 1e-3, "B=2 f32")
    check(600, ks[16], ks[17], jnp.float32, 1e-3, "B=600 f32")
    # default bf16-MXU path: f32 accumulation, tolerance sized for bf16 rounding.
    check(2, ks[0], ks[1], jnp.bfloat16, 5e-2, "B=2 bf16")
    check(600, ks[16], ks[17], jnp.bfloat16, 5e-2, "B=600 bf16")

    print("KERNEL_OK")
</pallas_src>

<mosaic_0001>
module attributes {stable_mosaic.version = 11 : i64} {
  func.func @cnn_feature_kernel(%arg0: i32, %arg1: memref<8x176xf32, #tpu.memory_space<vmem>>, %arg2: memref<8x34xf32, #tpu.memory_space<vmem>>, %arg3: memref<176x152xf32, #tpu.memory_space<vmem>>, %arg4: memref<1x152xf32, #tpu.memory_space<vmem>>, %arg5: memref<152x98xf32, #tpu.memory_space<vmem>>, %arg6: memref<1x98xf32, #tpu.memory_space<vmem>>, %arg7: memref<1x98xf32, #tpu.memory_space<vmem>>, %arg8: memref<1x34xf32, #tpu.memory_space<vmem>>, %arg9: memref<1x1xf32, #tpu.memory_space<vmem>>, %arg10: memref<8x1xf32, #tpu.memory_space<vmem>>) attributes {dimension_semantics = [#tpu.dimension_semantics<parallel>], iteration_bounds = array<i64: 1>, scalar_prefetch = 0 : i64, scratch_operands = 0 : i64, tpu.core_type = #tpu.core_type<tc>, window_params = [{transform_indices = @transform_0, window_bounds = array<i64: 8, 176>}, {transform_indices = @transform_1, window_bounds = array<i64: 8, 34>}, {pipeline_mode = #tpu.pipeline_mode<synchronous>, transform_indices = @transform_2, window_bounds = array<i64: 176, 152>}, {pipeline_mode = #tpu.pipeline_mode<synchronous>, transform_indices = @transform_3, window_bounds = array<i64: 1, 152>}, {pipeline_mode = #tpu.pipeline_mode<synchronous>, transform_indices = @transform_4, window_bounds = array<i64: 152, 98>}, {pipeline_mode = #tpu.pipeline_mode<synchronous>, transform_indices = @transform_5, window_bounds = array<i64: 1, 98>}, {pipeline_mode = #tpu.pipeline_mode<synchronous>, transform_indices = @transform_6, window_bounds = array<i64: 1, 98>}, {pipeline_mode = #tpu.pipeline_mode<synchronous>, transform_indices = @transform_7, window_bounds = array<i64: 1, 34>}, {pipeline_mode = #tpu.pipeline_mode<synchronous>, transform_indices = @transform_8, window_bounds = array<i64: 1, 1>}, {transform_indices = @transform_9, window_bounds = array<i64: 8, 1>}]} {
    %c0 = arith.constant 0 : index
    %c0_0 = arith.constant 0 : index
    %0 = vector.load %arg1[%c0, %c0_0] : memref<8x176xf32, #tpu.memory_space<vmem>>, vector<8x176xf32>
    %c0_1 = arith.constant 0 : index
    %c0_2 = arith.constant 0 : index
    %1 = vector.load %arg3[%c0_1, %c0_2] : memref<176x152xf32, #tpu.memory_space<vmem>>, vector<176x152xf32>
    %cst = arith.constant dense<0.000000e+00> : vector<8x152xf32>
    %2 = tpu.matmul %0, %1, %cst {dimension_numbers = #tpu.dot_dimension_numbers<[1], [0], [0], [1], [0, 0, 1, 1], [], []>} : vector<8x176xf32>, vector<176x152xf32>, vector<8x152xf32> -> vector<8x152xf32>
    %c0_3 = arith.constant 0 : index
    %c0_4 = arith.constant 0 : index
    %3 = vector.load %arg4[%c0_3, %c0_4] : memref<1x152xf32, #tpu.memory_space<vmem>>, vector<1x152xf32>
    %4 = vector.broadcast %3 : vector<1x152xf32> to vector<8x152xf32>
    %5 = arith.addf %2, %4 : vector<8x152xf32>
    %cst_5 = arith.constant 0.000000e+00 : f32
    %6 = vector.broadcast %cst_5 : f32 to vector<8x152xf32>
    %7 = arith.maximumf %5, %6 : vector<8x152xf32>
    %c0_6 = arith.constant 0 : index
    %c0_7 = arith.constant 0 : index
    %8 = vector.load %arg5[%c0_6, %c0_7] : memref<152x98xf32, #tpu.memory_space<vmem>>, vector<152x98xf32>
    %cst_8 = arith.constant dense<0.000000e+00> : vector<8x98xf32>
    %9 = tpu.matmul %7, %8, %cst_8 {dimension_numbers = #tpu.dot_dimension_numbers<[1], [0], [0], [1], [0, 0, 1, 1], [], []>} : vector<8x152xf32>, vector<152x98xf32>, vector<8x98xf32> -> vector<8x98xf32>
    %c0_9 = arith.constant 0 : index
    %c0_10 = arith.constant 0 : index
    %10 = vector.load %arg6[%c0_9, %c0_10] : memref<1x98xf32, #tpu.memory_space<vmem>>, vector<1x98xf32>
    %11 = vector.broadcast %10 : vector<1x98xf32> to vector<8x98xf32>
    %12 = arith.addf %9, %11 : vector<8x98xf32>
    %cst_11 = arith.constant 0.000000e+00 : f32
    %13 = vector.broadcast %cst_11 : f32 to vector<8x98xf32>
    %14 = arith.maximumf %12, %13 : vector<8x98xf32>
    %c0_12 = arith.constant 0 : index
    %c0_13 = arith.constant 0 : index
    %15 = vector.load %arg7[%c0_12, %c0_13] : memref<1x98xf32, #tpu.memory_space<vmem>>, vector<1x98xf32>
    %16 = vector.broadcast %15 : vector<1x98xf32> to vector<8x98xf32>
    %17 = arith.mulf %14, %16 : vector<8x98xf32>
    %cst_14 = arith.constant dense<0.000000e+00> : vector<8xf32>
    %18 = vector.multi_reduction <add>, %17, %cst_14 [1] : vector<8x98xf32> to vector<8xf32>
    %19 = vector.shape_cast %18 : vector<8xf32> to vector<8x1xf32>
    %c0_15 = arith.constant 0 : index
    %c0_16 = arith.constant 0 : index
    %20 = vector.load %arg2[%c0_15, %c0_16] : memref<8x34xf32, #tpu.memory_space<vmem>>, vector<8x34xf32>
    %c0_17 = arith.constant 0 : index
    %c0_18 = arith.constant 0 : index
    %21 = vector.load %arg8[%c0_17, %c0_18] : memref<1x34xf32, #tpu.memory_space<vmem>>, vector<1x34xf32>
    %22 = vector.broadcast %21 : vector<1x34xf32> to vector<8x34xf32>
    %23 = arith.mulf %20, %22 : vector<8x34xf32>
    %cst_19 = arith.constant dense<0.000000e+00> : vector<8xf32>
    %24 = vector.multi_reduction <add>, %23, %cst_19 [1] : vector<8x34xf32> to vector<8xf32>
    %25 = vector.shape_cast %24 : vector<8xf32> to vector<8x1xf32>
    %26 = arith.addf %19, %25 : vector<8x1xf32>
    %c0_20 = arith.constant 0 : index
    %c0_21 = arith.constant 0 : index
    %27 = vector.load %arg9[%c0_20, %c0_21] : memref<1x1xf32, #tpu.memory_space<vmem>>, vector<1x1xf32>
    %28 = vector.broadcast %27 : vector<1x1xf32> to vector<8x1xf32>
    %29 = arith.addf %26, %28 : vector<8x1xf32>
    %c0_22 = arith.constant 0 : index
    %c0_23 = arith.constant 0 : index
    %30 = vector.load %arg10[%c0_22, %c0_23] : memref<8x1xf32, #tpu.memory_space<vmem>>, vector<8x1xf32>
    tpu.vector_store %arg10[%c0_22, %c0_23], %29 {strides = array<i32>} : memref<8x1xf32, #tpu.memory_space<vmem>>, vector<8x1xf32>,
    return
  }
  func.func @transform_0(%arg0: i32) -> (i32, i32) {
    %c0_i32 = arith.constant 0 : i32
    %c0_i32_0 = arith.constant 0 : i32
    return %arg0, %c0_i32 : i32, i32
  }
  func.func @transform_1(%arg0: i32) -> (i32, i32) {
    %c0_i32 = arith.constant 0 : i32
    %c0_i32_0 = arith.constant 0 : i32
    return %arg0, %c0_i32 : i32, i32
  }
  func.func @transform_2(%arg0: i32) -> (i32, i32) {
    %c0_i32 = arith.constant 0 : i32
    %c0_i32_0 = arith.constant 0 : i32
    %c0_i32_1 = arith.constant 0 : i32
    return %c0_i32, %c0_i32_0 : i32, i32
  }
  func.func @transform_3(%arg0: i32) -> (i32, i32) {
    %c0_i32 = arith.constant 0 : i32
    %c0_i32_0 = arith.constant 0 : i32
    %c0_i32_1 = arith.constant 0 : i32
    return %c0_i32, %c0_i32_0 : i32, i32
  }
  func.func @transform_4(%arg0: i32) -> (i32, i32) {
    %c0_i32 = arith.constant 0 : i32
    %c0_i32_0 = arith.constant 0 : i32
    %c0_i32_1 = arith.constant 0 : i32
    return %c0_i32, %c0_i32_0 : i32, i32
  }
  func.func @transform_5(%arg0: i32) -> (i32, i32) {
    %c0_i32 = arith.constant 0 : i32
    %c0_i32_0 = arith.constant 0 : i32
    %c0_i32_1 = arith.constant 0 : i32
    return %c0_i32, %c0_i32_0 : i32, i32
  }
  func.func @transform_6(%arg0: i32) -> (i32, i32) {
    %c0_i32 = arith.constant 0 : i32
    %c0_i32_0 = arith.constant 0 : i32
    %c0_i32_1 = arith.constant 0 : i32
    return %c0_i32, %c0_i32_0 : i32, i32
  }
  func.func @transform_7(%arg0: i32) -> (i32, i32) {
    %c0_i32 = arith.constant 0 : i32
    %c0_i32_0 = arith.constant 0 : i32
    %c0_i32_1 = arith.constant 0 : i32
    return %c0_i32, %c0_i32_0 : i32, i32
  }
  func.func @transform_8(%arg0: i32) -> (i32, i32) {
    %c0_i32 = arith.constant 0 : i32
    %c0_i32_0 = arith.constant 0 : i32
    %c0_i32_1 = arith.constant 0 : i32
    return %c0_i32, %c0_i32_0 : i32, i32
  }
  func.func @transform_9(%arg0: i32) -> (i32, i32) {
    %c0_i32 = arith.constant 0 : i32
    %c0_i32_0 = arith.constant 0 : i32
    return %arg0, %c0_i32 : i32, i32
  }
}

</mosaic_0001>

<llo_original>
// kernel: tile.13
$region0: #{tile.13}
  #allocation0 [shape = 's32[1]{0}', space=sflag, size = 0x4, scoped, tag = 'scoped memory for tile.13']
  %s0 = inlined_call_operand.vmem [shape: f32[8], index: 0, kind: input, shape index: {}]
  %s1 = inlined_call_operand.vmem [shape: f32[19,8], index: 1, kind: output, shape index: {}]
  // Predicated region
  $region2: #{tile.13} parent=0 // pred_check
    _
  $region3: #{tile.13} parent=0 // pred_check_branch
    %3 = sbr.rel (0) target = $region5
  $region4: #{tile.13} parent=0 // pred_region
    _
  $region5: #{tile.13} parent=0 // pred_fallthru
    _
  %v4 = vld [vmem:[%s0] ss:$0 sm:$0xff]
  %5 = vst [vmem:[%s1] sm:$0xff] %v4
  %s6 = scalar_lea.vmem %s1, 8
  %7 = vst [vmem:[%s6] sm:$0xff] %v4
  %s8 = scalar_lea.vmem %s1, 16
  %9 = vst [vmem:[%s8] sm:$0xff] %v4

// kernel: tile.14
$region0: #{tile.14}
  %s0 = inlined_call_operand.vmem [shape: f32[19,8], index: 0, kind: input, shape index: {}]
  %s1 = inlined_call_operand.vmem [shape: f32[1,152], index: 1, kind: output, shape index: {}]
  $region1: #{tile.14} parent=0
    #allocation0 [shape = 'u8[8192]{0}', space=vmem, size = 0x2000, scoped, tag = 'scoped mem for output reshape']
    %s2 = smov 3
    %v3 = vld [vmem:[%s0] ss:$16 sm:%s2]
    %vm4 = vcmask 64512
    %5 = vst.msk [vmem:[#allocation0] ss:$8 sm:$0x3] %vm4, %v3
    %s6 = scalar_lea.vmem %s0, 15
    %v7 = vld [vmem:[%s6] sm:$0x1]
    %8 = vrot.lane.b32.xlu0 %v7, 120
    %v9 = vpop.permute.xlu0 %8
    %vm10 = vcmask 1048512
    %11 = vst.msk [vmem:[#allocation0] sm:$0x1] %vm10, %v9
    %s12 = scalar_lea.vmem %s0, 14
    %v13 = vld [vmem:[%s12] sm:$0x1]
    %14 = vrot.lane.b32.xlu0 %v13, 112
    %v15 = vpop.permute.xlu0 %14
    %vm16 = vcmask 982912
    %17 = vst.msk [vmem:[#allocation0] sm:$0x1] %vm16, %v15
    %s18 = scalar_lea.vmem %s0, 13
    %v19 = vld [vmem:[%s18] sm:$0x1]
    %20 = vrot.lane.b32.xlu0 %v19, 104
    %v21 = vpop.permute.xlu0 %20
    %vm22 = vcmask 917312
    %23 = vst.msk [vmem:[#allocation0] sm:$0x1] %vm22, %v21
    %s24 = scalar_lea.vmem %s0, 12
    %v25 = vld [vmem:[%s24] sm:$0x1]
    %26 = vrot.lane.b32.xlu0 %v25, 96
    %v27 = vpop.permute.xlu0 %26
    %vm28 = vcmask 851712
    %29 = vst.msk [vmem:[#allocation0] sm:$0x1] %vm28, %v27
    %s30 = scalar_lea.vmem %s0, 11
    %v31 = vld [vmem:[%s30] sm:$0x1]
    %32 = vrot.lane.b32.xlu0 %v31, 88
    %v33 = vpop.permute.xlu0 %32
    %vm34 = vcmask 786112
    %35 = vst.msk [vmem:[#allocation0] sm:$0x1] %vm34, %v33
    %s36 = scalar_lea.vmem %s0, 10
    %v37 = vld [vmem:[%s36] sm:$0x1]
    %38 = vrot.lane.b32.xlu0 %v37, 80
    %v39 = vpop.permute.xlu0 %38
    %vm40 = vcmask 720512
    %41 = vst.msk [vmem:[#allocation0] sm:$0x1] %vm40, %v39
    %s42 = scalar_lea.vmem %s0, 9
    %v43 = vld [vmem:[%s42] sm:$0x1]
    %44 = vrot.lane.b32.xlu0 %v43, 72
    %v45 = vpop.permute.xlu0 %44
    %vm46 = vcmask 654912
    %47 = vst.msk [vmem:[#allocation0] sm:$0x1] %vm46, %v45
    %s48 = scalar_lea.vmem %s0, 8
    %v49 = vld [vmem:[%s48] sm:$0x1]
    %50 = vrot.lane.b32.xlu0 %v49, 64
    %v51 = vpop.permute.xlu0 %50
    %vm52 = vcmask 589312
    %53 = vst.msk [vmem:[#allocation0] sm:$0x1] %vm52, %v51
    %s54 = scalar_lea.vmem %s0, 7
    %v55 = vld [vmem:[%s54] sm:$0x1]
    %56 = vrot.lane.b32.xlu0 %v55, 56
    %v57 = vpop.permute.xlu0 %56
    %vm58 = vcmask 523712
    %59 = vst.msk [vmem:[#allocation0] sm:$0x1] %vm58, %v57
    %s60 = scalar_lea.vmem %s0, 6
    %v61 = vld [vmem:[%s60] sm:$0x1]
    %62 = vrot.lane.b32.xlu0 %v61, 48
    %v63 = vpop.permute.xlu0 %62
    %vm64 = vcmask 458112
    %65 = vst.msk [vmem:[#allocation0] sm:$0x1] %vm64, %v63
    %s66 = scalar_lea.vmem %s0, 5
    %v67 = vld [vmem:[%s66] sm:$0x1]
    %68 = vrot.lane.b32.xlu0 %v67, 40
    %v69 = vpop.permute.xlu0 %68
    %vm70 = vcmask 392512
    %71 = vst.msk [vmem:[#allocation0] sm:$0x1] %vm70, %v69
    %s72 = scalar_lea.vmem %s0, 4
    %v73 = vld [vmem:[%s72] sm:$0x1]
    %74 = vrot.lane.b32.xlu0 %v73, 32
    %v75 = vpop.permute.xlu0 %74
    %vm76 = vcmask 326912
    %77 = vst.msk [vmem:[#allocation0] sm:$0x1] %vm76, %v75
    %s78 = scalar_lea.vmem %s0, 3
    %v79 = vld [vmem:[%s78] sm:$0x1]
    %80 = vrot.lane.b32.xlu0 %v79, 24
    %v81 = vpop.permute.xlu0 %80
    %vm82 = vcmask 261312
    %83 = vst.msk [vmem:[#allocation0] sm:$0x1] %vm82, %v81
    %s84 = scalar_lea.vmem %s0, 2
    %s85 = smov 3
    %v86 = vld [vmem:[%s84] ss:$16 sm:%s85]
    %87 = vrot.lane.b32.xlu0 %v86, 16
    %v88 = vpop.permute.xlu0 %87
    %vm89 = vcmask 195712
    %90 = vst.msk [vmem:[#allocation0] ss:$8 sm:$0x3] %vm89, %v88
    %s91 = scalar_lea.vmem %s0, 1
    %s92 = smov 3
    %v93 = vld [vmem:[%s91] ss:$16 sm:%s92]
    %94 = vrot.lane.b32.xlu0 %v93, 8
    %v95 = vpop.permute.xlu0 %94
    %vm96 = vcmask 130112
    %97 = vst.msk [vmem:[#allocation0] ss:$8 sm:$0x3] %vm96, %v95
    %s99 = sshllo.u32 0, 1
    %v101 = vld [vmem:[#allocation0] sm:%s99]
    %s102 = sshllo.u32 0, 1
    %103 = vst [vmem:[%s1] sm:%s102] %v101
    %s104 = scalar_lea.vmem [#allocation0], 8
    %v105 = vld [vmem:[%s104] sm:%s99]
    %s106 = sshllo.u32 0, 1
    %s107 = scalar_lea.vmem %s1, 1
    %108 = vst [vmem:[%s107] sm:%s106] %v105

// kernel: tile.18
$region0: #{tile.18}
  #allocation0 [shape = 's32[1]{0}', space=sflag, size = 0x4, scoped, tag = 'scoped memory for tile.18']
  %s0 = inlined_call_operand.vmem [shape: f32[14], index: 0, kind: input, shape index: {}]
  %s1 = inlined_call_operand.vmem [shape: f32[7,14], index: 1, kind: output, shape index: {}]
  // Predicated region
  $region2: #{tile.18} parent=0 // pred_check
    _
  $region3: #{tile.18} parent=0 // pred_check_branch
    %3 = sbr.rel (0) target = $region5
  $region4: #{tile.18} parent=0 // pred_region
    _
  $region5: #{tile.18} parent=0 // pred_fallthru
    _
  %v4 = vld [vmem:[%s0] ss:$0 sm:$0xff]
  %5 = vst [vmem:[%s1] sm:$0xff] %v4

// kernel: tile.19
$region0: #{tile.19}
  %s0 = inlined_call_operand.vmem [shape: f32[7,14], index: 0, kind: input, shape index: {}]
  %s1 = inlined_call_operand.vmem [shape: f32[1,98], index: 1, kind: output, shape index: {}]
  $region1: #{tile.19} parent=0
    #allocation0 [shape = 'u8[4096]{0}', space=vmem, size = 0x1000, scoped, tag = 'scoped mem for output reshape']
    %v2 = vld [vmem:[%s0] sm:$0x1]
    %vm3 = vcmask 113664
    %4 = vst.msk [vmem:[#allocation0] sm:$0x1] %vm3, %v2
    %s5 = scalar_lea.vmem %s0, 6
    %v6 = vld [vmem:[%s5] sm:$0x1]
    %7 = vrot.lane.b32.xlu0 %v6, 84
    %v8 = vpop.permute.xlu0 %7
    %vm9 = vcmask 802464
    %10 = vst.msk [vmem:[#allocation0] sm:$0x1] %vm9, %v8
    %s11 = scalar_lea.vmem %s0, 5
    %v12 = vld [vmem:[%s11] sm:$0x1]
    %13 = vrot.lane.b32.xlu0 %v12, 70
    %v14 = vpop.permute.xlu0 %13
    %vm15 = vcmask 687664
    %16 = vst.msk [vmem:[#allocation0] sm:$0x1] %vm15, %v14
    %s17 = scalar_lea.vmem %s0, 4
    %v18 = vld [vmem:[%s17] sm:$0x1]
    %19 = vrot.lane.b32.xlu0 %v18, 56
    %v20 = vpop.permute.xlu0 %19
    %vm21 = vcmask 572864
    %22 = vst.msk [vmem:[#allocation0] sm:$0x1] %vm21, %v20
    %s23 = scalar_lea.vmem %s0, 3
    %v24 = vld [vmem:[%s23] sm:$0x1]
    %25 = vrot.lane.b32.xlu0 %v24, 42
    %v26 = vpop.permute.xlu0 %25
    %vm27 = vcmask 458064
    %28 = vst.msk [vmem:[#allocation0] sm:$0x1] %vm27, %v26
    %s29 = scalar_lea.vmem %s0, 2
    %v30 = vld [vmem:[%s29] sm:$0x1]
    %31 = vrot.lane.b32.xlu0 %v30, 28
    %v32 = vpop.permute.xlu0 %31
    %vm33 = vcmask 343264
    %34 = vst.msk [vmem:[#allocation0] sm:$0x1] %vm33, %v32
    %s35 = scalar_lea.vmem %s0, 1
    %v36 = vld [vmem:[%s35] sm:$0x1]
    %37 = vrot.lane.b32.xlu0 %v36, 14
    %v38 = vpop.permute.xlu0 %37
    %vm39 = vcmask 228464
    %40 = vst.msk [vmem:[#allocation0] sm:$0x1] %vm39, %v38
    %s42 = sshllo.u32 0, 1
    %v44 = vld [vmem:[#allocation0] sm:%s42]
    %s45 = sshllo.u32 0, 1
    %46 = vst [vmem:[%s1] sm:%s45] %v44

// kernel: squeeze.5
$region0: #{squeeze.5}
  %s0 = inlined_call_operand.vmem [shape: f32[42], index: 0, kind: input, shape index: {}]
  %s1 = inlined_call_operand.vmem [shape: f32[14,3], index: 1, kind: output, shape index: {}]
  $region1: #{squeeze.5} parent=0
    #allocation0 [shape = 'u8[4096]{0}', space=vmem, size = 0x1000, scoped, tag = 'scoped mem for input reshape']
    %s3 = sshllo.u32 0, 1
    %v4 = vld [vmem:[%s0] sm:%s3]
    %5 = vst [vmem:[#allocation0] sm:%s3] %v4
    %v6 = vld [vmem:[#allocation0] sm:$0x1]
    %vm7 = vcmask 23552
    %8 = vst.msk [vmem:[%s1] sm:$0x1] %vm7, %v6
    %v9 = vld [vmem:[#allocation0] sm:$0x1]
    %10 = vrot.lane.b32.xlu0 %v9, 125
    %v11 = vpop.permute.xlu0 %10
    %vm12 = vcmask 23552
    %s13 = scalar_lea.vmem %s1, 1
    %14 = vst.msk [vmem:[%s13] sm:$0x1] %vm12, %v11
    %v15 = vld [vmem:[#allocation0] sm:$0x1]
    %16 = vrot.lane.b32.xlu0 %v15, 122
    %v17 = vpop.permute.xlu0 %16
    %vm18 = vcmask 23552
    %s19 = scalar_lea.vmem %s1, 2
    %20 = vst.msk [vmem:[%s19] sm:$0x1] %vm18, %v17
    %v21 = vld [vmem:[#allocation0] sm:$0x1]
    %22 = vrot.lane.b32.xlu0 %v21, 119
    %v23 = vpop.permute.xlu0 %22
    %vm24 = vcmask 23552
    %s25 = scalar_lea.vmem %s1, 3
    %26 = vst.msk [vmem:[%s25] sm:$0x1] %vm24, %v23
    %v27 = vld [vmem:[#allocation0] sm:$0x1]
    %28 = vrot.lane.b32.xlu0 %v27, 116
    %v29 = vpop.permute.xlu0 %28
    %vm30 = vcmask 23552
    %s31 = scalar_lea.vmem %s1, 4
    %32 = vst.msk [vmem:[%s31] sm:$0x1] %vm30, %v29
    %v33 = vld [vmem:[#allocation0] sm:$0x1]
    %34 = vrot.lane.b32.xlu0 %v33, 113
    %v35 = vpop.permute.xlu0 %34
    %vm36 = vcmask 23552
    %s37 = scalar_lea.vmem %s1, 5
    %38 = vst.msk [vmem:[%s37] sm:$0x1] %vm36, %v35
    %v39 = vld [vmem:[#allocation0] sm:$0x1]
    %40 = vrot.lane.b32.xlu0 %v39, 110
    %v41 = vpop.permute.xlu0 %40
    %vm42 = vcmask 23552
    %s43 = scalar_lea.vmem %s1, 6
    %44 = vst.msk [vmem:[%s43] sm:$0x1] %vm42, %v41
    %v45 = vld [vmem:[#allocation0] sm:$0x1]
    %46 = vrot.lane.b32.xlu0 %v45, 107
    %v47 = vpop.permute.xlu0 %46
    %vm48 = vcmask 23552
    %s49 = scalar_lea.vmem %s1, 7
    %50 = vst.msk [vmem:[%s49] sm:$0x1] %vm48, %v47
    %v51 = vld [vmem:[#allocation0] sm:$0x1]
    %52 = vrot.lane.b32.xlu0 %v51, 104
    %v53 = vpop.permute.xlu0 %52
    %vm54 = vcmask 23552
    %s55 = scalar_lea.vmem %s1, 8
    %56 = vst.msk [vmem:[%s55] sm:$0x1] %vm54, %v53
    %v57 = vld [vmem:[#allocation0] sm:$0x1]
    %58 = vrot.lane.b32.xlu0 %v57, 101
    %v59 = vpop.permute.xlu0 %58
    %vm60 = vcmask 23552
    %s61 = scalar_lea.vmem %s1, 9
    %62 = vst.msk [vmem:[%s61] sm:$0x1] %vm60, %v59
    %v63 = vld [vmem:[#allocation0] sm:$0x1]
    %64 = vrot.lane.b32.xlu0 %v63, 98
    %v65 = vpop.permute.xlu0 %64
    %vm66 = vcmask 23552
    %s67 = scalar_lea.vmem %s1, 10
    %68 = vst.msk [vmem:[%s67] sm:$0x1] %vm66, %v65
    %v69 = vld [vmem:[#allocation0] sm:$0x1]
    %70 = vrot.lane.b32.xlu0 %v69, 95
    %v71 = vpop.permute.xlu0 %70
    %vm72 = vcmask 23552
    %s73 = scalar_lea.vmem %s1, 11
    %74 = vst.msk [vmem:[%s73] sm:$0x1] %vm72, %v71
    %v75 = vld [vmem:[#allocation0] sm:$0x1]
    %76 = vrot.lane.b32.xlu0 %v75, 92
    %v77 = vpop.permute.xlu0 %76
    %vm78 = vcmask 23552
    %s79 = scalar_lea.vmem %s1, 12
    %80 = vst.msk [vmem:[%s79] sm:$0x1] %vm78, %v77
    %v81 = vld [vmem:[#allocation0] sm:$0x1]
    %82 = vrot.lane.b32.xlu0 %v81, 89
    %v83 = vpop.permute.xlu0 %82
    %vm84 = vcmask 23552
    %s85 = scalar_lea.vmem %s1, 13
    %86 = vst.msk [vmem:[%s85] sm:$0x1] %vm84, %v83

// kernel: model_cnn_feature_forward.1
$region0: #{model_cnn_feature_forward.1}
  #allocation0 [shape = 'u32[]', space=smem, size = 0x4, offset = 0x4, fixed_abs, tag = 'smem constant byte address 0x4 - core index']
  #allocation1 [shape = 'u32[144,128]{1,0:T(1,128)}', space=vmem, size = 0x12000, scoped, tag = 'internal scratch']
  #allocation2 [shape = 'f32[1,1]{1,0:T(1,128)S(1)}', space=vmem, size = 0x200, scoped, tag = 'scoped memory for model_cnn_feature_forward.1']
  %s0 = inlined_call_operand.vmem [shape: f32[2,176], index: 0, kind: input, shape index: {}]
  %s1 = inlined_call_operand.vmem [shape: f32[2,34], index: 1, kind: input, shape index: {}]
  %s2 = inlined_call_operand.vmem [shape: f32[176,152], index: 2, kind: input, shape index: {}]
  %s3 = inlined_call_operand.vmem [shape: f32[1,152], index: 3, kind: input, shape index: {}]
  %s4 = inlined_call_operand.vmem [shape: f32[152,98], index: 4, kind: input, shape index: {}]
  %s5 = inlined_call_operand.vmem [shape: f32[1,98], index: 5, kind: input, shape index: {}]
  %s6 = inlined_call_operand.vmem [shape: f32[1,98], index: 6, kind: input, shape index: {}]
  %s7 = inlined_call_operand.vmem [shape: f32[1,34], index: 7, kind: input, shape index: {}]
  %s8 = inlined_call_operand.<no memory space> [shape: f32[1,1], index: 8, kind: input, shape index: {}]
  %s9 = inlined_call_operand.vmem [shape: f32[2,1], index: 9, kind: output, shape index: {}]
  %s10 = sld [smem:[#allocation0]]
  $region76: #{model_cnn_feature_forward.1} parent=0
    _
  %s12 = ssub.s32 1, %s10
  %s13 = scalar_select 0, %s12, %s10
  %v14 = vstv %s8
  %15 = vst [vmem:[#allocation2] sm:$0x1] %v14
  $region1: #{model_cnn_feature_forward.1} parent=0
    #allocation3 [shape = 'u8[4096]{0}', space=vmem, size = 0x1000, scoped, tag = 'output window, operand 0, single buffered']
    // Predicated region
    $region2: #{model_cnn_feature_forward.1} parent=1 // pred_check
      _
    $region3: #{model_cnn_feature_forward.1} parent=1 // pred_check_branch
      %17 = sbr.rel (0) target = $region5
    $region4: #{model_cnn_feature_forward.1} parent=1 // pred_region
      _
    $region5: #{model_cnn_feature_forward.1} parent=1 // pred_fallthru
      _
    // Predicated region
    $region6: #{model_cnn_feature_forward.1} parent=1 // pred_check
      _
    $region7: #{model_cnn_feature_forward.1} parent=1 // pred_check_branch
      %19 = sbr.rel (0) target = $region9
    $region8: #{model_cnn_feature_forward.1} parent=1 // pred_region
      _
    $region9: #{model_cnn_feature_forward.1} parent=1 // pred_fallthru
      _
    // Predicated region
    $region10: #{model_cnn_feature_forward.1} parent=1 // pred_check
      _
    $region11: #{model_cnn_feature_forward.1} parent=1 // pred_check_branch
      %21 = sbr.rel (0) target = $region13
    $region12: #{model_cnn_feature_forward.1} parent=1 // pred_region
      _
    $region13: #{model_cnn_feature_forward.1} parent=1 // pred_fallthru
      _
    // Predicated region
    $region14: #{model_cnn_feature_forward.1} parent=1 // pred_check
      _
    $region15: #{model_cnn_feature_forward.1} parent=1 // pred_check_branch
      %23 = sbr.rel (0) target = $region17
    $region16: #{model_cnn_feature_forward.1} parent=1 // pred_region
      _
    $region17: #{model_cnn_feature_forward.1} parent=1 // pred_fallthru
      _
    // Predicated region
    $region18: #{model_cnn_feature_forward.1} parent=1 // pred_check
      _
    $region19: #{model_cnn_feature_forward.1} parent=1 // pred_check_branch
      %25 = sbr.rel (0) target = $region21
    $region20: #{model_cnn_feature_forward.1} parent=1 // pred_region
      _
    $region21: #{model_cnn_feature_forward.1} parent=1 // pred_fallthru
      _
    // Predicated region
    $region22: #{model_cnn_feature_forward.1} parent=1 // pred_check
      _
    $region23: #{model_cnn_feature_forward.1} parent=1 // pred_check_branch
      %27 = sbr.rel (0) target = $region25
    $region24: #{model_cnn_feature_forward.1} parent=1 // pred_region
      _
    $region25: #{model_cnn_feature_forward.1} parent=1 // pred_fallthru
      _
    // Predicated region
    $region26: #{model_cnn_feature_forward.1} parent=1 // pred_check
      _
    $region27: #{model_cnn_feature_forward.1} parent=1 // pred_check_branch
      %29 = sbr.rel (0) target = $region29
    $region28: #{model_cnn_feature_forward.1} parent=1 // pred_region
      _
    $region29: #{model_cnn_feature_forward.1} parent=1 // pred_fallthru
      _
    // Predicated region
    $region30: #{model_cnn_feature_forward.1} parent=1 // pred_check
      _
    $region31: #{model_cnn_feature_forward.1} parent=1 // pred_check_branch
      %31 = sbr.rel (0) target = $region33
    $region32: #{model_cnn_feature_forward.1} parent=1 // pred_region
      _
    $region33: #{model_cnn_feature_forward.1} parent=1 // pred_fallthru
      _
    // Predicated region
    $region34: #{model_cnn_feature_forward.1} parent=1 // pred_check
      _
    $region35: #{model_cnn_feature_forward.1} parent=1 // pred_check_branch
      %33 = sbr.rel (0) target = $region37
    $region36: #{model_cnn_feature_forward.1} parent=1 // pred_region
      _
    $region37: #{model_cnn_feature_forward.1} parent=1 // pred_fallthru
      _
    %v34 = vld [vmem:[%s0] sm:$0xf]
    %v35 = vld [vmem:[%s0 + $0x4] sm:$0xf]
    %v36 = vld [vmem:[%s0 + $0x8] sm:$0xf]
    %v37 = vld [vmem:[%s0 + $0xc] sm:$0xf]
    %v38 = vld [vmem:[%s2] sm:$0xff]
    %v39 = vld [vmem:[%s2 + $0x8] sm:$0xff]
    %v40 = vld [vmem:[%s2 + $0x10] sm:$0xff]
    %v41 = vld [vmem:[%s2 + $0x18] sm:$0xff]
    %v42 = vld [vmem:[%s2 + $0x20] sm:$0xff]
    %v43 = vld [vmem:[%s2 + $0x28] sm:$0xff]
    %v44 = vld [vmem:[%s2 + $0x30] sm:$0xff]
    %v45 = vld [vmem:[%s2 + $0x38] sm:$0xff]
    %v46 = vld [vmem:[%s2 + $0x40] sm:$0xff]
    %v47 = vld [vmem:[%s2 + $0x48] sm:$0xff]
    %v48 = vld [vmem:[%s2 + $0x50] sm:$0xff]
    %v49 = vld [vmem:[%s2 + $0x58] sm:$0xff]
    %v50 = vld [vmem:[%s2 + $0x60] sm:$0xff]
    %v51 = vld [vmem:[%s2 + $0x68] sm:$0xff]
    %v52 = vld [vmem:[%s2 + $0x70] sm:$0xff]
    %v53 = vld [vmem:[%s2 + $0x78] sm:$0xff]
    %v54 = vld [vmem:[%s2 + $0x80] sm:$0xff]
    %v55 = vld [vmem:[%s2 + $0x88] sm:$0xff]
    %v56 = vld [vmem:[%s2 + $0x90] sm:$0xff]
    %v57 = vld [vmem:[%s2 + $0x98] sm:$0xff]
    %v58 = vld [vmem:[%s2 + $0xa0] sm:$0xff]
    %v59 = vld [vmem:[%s2 + $0xa8] sm:$0xff]
    %v60 = vld [vmem:[%s2 + $0xb0] sm:$0xff]
    %v61 = vld [vmem:[%s2 + $0xb8] sm:$0xff]
    %v62 = vld [vmem:[%s2 + $0xc0] sm:$0xff]
    %v63 = vld [vmem:[%s2 + $0xc8] sm:$0xff]
    %v64 = vld [vmem:[%s2 + $0xd0] sm:$0xff]
    %v65 = vld [vmem:[%s2 + $0xd8] sm:$0xff]
    %v66 = vld [vmem:[%s2 + $0xe0] sm:$0xff]
    %v67 = vld [vmem:[%s2 + $0xe8] sm:$0xff]
    %v68 = vld [vmem:[%s2 + $0xf0] sm:$0xff]
    %v69 = vld [vmem:[%s2 + $0xf8] sm:$0xff]
    %v70 = vld [vmem:[%s2 + $0x100] sm:$0xff]
    %v71 = vld [vmem:[%s2 + $0x108] sm:$0xff]
    %v72 = vld [vmem:[%s2 + $0x110] sm:$0xff]
    %v73 = vld [vmem:[%s2 + $0x118] sm:$0xff]
    %v74 = vld [vmem:[%s2 + $0x120] sm:$0xff]
    %v75 = vld [vmem:[%s2 + $0x128] sm:$0xff]
    %v76 = vld [vmem:[%s2 + $0x130] sm:$0xff]
    %v77 = vld [vmem:[%s2 + $0x138] sm:$0xff]
    %v78 = vld [vmem:[%s2 + $0x140] sm:$0xff]
    %v79 = vld [vmem:[%s2 + $0x148] sm:$0xff]
    %v80 = vld [vmem:[%s2 + $0x150] sm:$0xff]
    %v81 = vld [vmem:[%s2 + $0x158] sm:$0xff]
    %v82 = vld [vmem:[%s3] sm:$0x3]
    %v84 = vlaneseq
    %v85 = vshrl.u32 %v84, 7
    %v86 = vsub.s32 0, %v85
    %v87 = vrot.slane %v82, %v86
    %v88 = vlaneseq
    %v89 = vshrl.u32 %v88, 7
    %v90 = vsub.s32 1, %v89
    %v91 = vrot.slane %v82, %v90
    %v98 = vcombine.low %v34, %v35
    %v99 = vcombine.low %v36, %v37
    %v101 = vunpack.c.l.s4 1983009808
    %v102 = vunpack.c.0.s8 %v101
    %v103 = vlaneseq
    %v104 = vshrl.u32 %v103, 7
    %v105 = vsub.s32 %v102, %v104
    %v106 = vrot.slane %v98, %v105
    %v108 = vunpack.c.l.s4 1983009808
    %v109 = vunpack.c.0.s8 %v108
    %v110 = vlaneseq
    %v111 = vshrl.u32 %v110, 7
    %v112 = vsub.s32 %v109, %v111
    %v113 = vrot.slane %v99, %v112
    %v114 = vcombine.low %v106, %v113
    %v115 = vcombine.high %v106, %v113
    %vm117 = vcmask 392192
    %v118 = vsel %vm117, %v115, 0
    %120 = vmatprep.subr.mxu0 %v39
    %121 = vmatpush1.msra.mxu0 %v38
    %122 = vmatprep.subr.mxu0 %v41
    %123 = vmatpush1.msra.mxu0 %v40
    %124 = vmatprep.subr.mxu0 %v43
    %125 = vmatpush1.msra.mxu0 %v42
    %126 = vmatprep.subr.mxu0 %v45
    %127 = vmatpush1.msra.mxu0 %v44
    %128 = vmatprep.subr.mxu0 %v47
    %129 = vmatpush1.msra.mxu0 %v46
    %130 = vmatprep.subr.mxu0 %v49
    %131 = vmatpush1.msra.mxu0 %v48
    %132 = vmatprep.subr.mxu0 %v51
    %133 = vmatpush1.msra.mxu0 %v50
    %134 = vmatprep.subr.mxu0 %v53
    %135 = vmatpush1.msra.mxu0 %v52
    %136 = vmatprep.subr.mxu0 %v55
    %137 = vmatpush1.msra.mxu0 %v54
    %138 = vmatprep.subr.mxu0 %v57
    %139 = vmatpush1.msra.mxu0 %v56
    %140 = vmatprep.subr.mxu0 %v59
    %141 = vmatpush1.msra.mxu0 %v58
    %142 = vmatprep.subr.mxu0 %v61
    %143 = vmatpush1.msra.mxu0 %v60
    %144 = vmatprep.subr.mxu0 %v63
    %145 = vmatpush1.msra.mxu0 %v62
    %146 = vmatprep.subr.mxu0 %v65
    %147 = vmatpush1.msra.mxu0 %v64
    %148 = vmatprep.subr.mxu0 %v67
    %149 = vmatpush1.msra.mxu0 %v66
    %150 = vmatprep.subr.mxu0 %v69
    %151 = vmatpush1.msra.mxu0 %v68
    %152 = vmatprep.subr.mxu0 %v71
    %153 = vmatpush1.msra.mxu0 %v70
    %154 = vmatprep.subr.mxu0 %v73
    %155 = vmatpush1.msra.mxu0 %v72
    %156 = vmatprep.subr.mxu0 %v75
    %157 = vmatpush1.msra.mxu0 %v74
    %158 = vmatprep.subr.mxu0 %v77
    %159 = vmatpush1.msra.mxu0 %v76
    %160 = vmatprep.subr.mxu0 %v79
    %161 = vmatpush1.msra.mxu0 %v78
    %162 = vmatprep.subr.mxu0 %v81
    %163 = vmatpush1.msra.mxu0 %v80
    %164 = vmatprep.subr.mxu0 0.0
    %165 = vmatpush1.msra.mxu0 0.0
    %166 = vmatprep.subr.mxu0 0.0
    %167 = vmatpush1.msra.mxu0 0.0
    %168 = vmatprep.subr.mxu0 0.0
    %169 = vmatpush1.msra.mxu0 0.0
    %170 = vmatprep.subr.mxu0 0.0
    %171 = vmatpush1.msra.mxu0 0.0
    %172 = vmatprep.subr.mxu0 0.0
    %173 = vmatpush1.msra.mxu0 0.0
    %174 = vmatprep.subr.mxu0 0.0
    %175 = vmatpush1.msra.mxu0 0.0
    %176 = vmatprep.subr.mxu0 0.0
    %177 = vmatpush1.msra.mxu0 0.0
    %178 = vmatprep.subr.mxu0 0.0
    %179 = vmatpush1.msra.mxu0 0.0
    %180 = vmatprep.subr.mxu0 0.0
    %181 = vmatpush1.msra.mxu0 0.0
    %182 = vmatprep.subr.mxu0 0.0
    %183 = vmatpush1.msra.mxu0 0.0
    %184 = vmatprep.mubr.f32.mxu0 %v118
    %185 = vmatmul.mubr.f32.gmra.mrb[0].mxu0 %v114
    %v186 = vpop.f32.mrb[0].mxu0
    %v187 = vadd.f32 %v87, %v186
    %v188 = vpop.f32.mrb[0].mxu0
    %v189 = vadd.f32 %v91, %v188
    %190 = vdwg.mxu0
    %v191 = vmax.f32 %v187, 0.0
    %v192 = vmax.f32 %v189, 0.0
    %v193 = vld [vmem:[%s4] sm:$0xff]
    %v194 = vld [vmem:[%s4 + $0x8] sm:$0xff]
    %v195 = vld [vmem:[%s4 + $0x10] sm:$0xff]
    %v196 = vld [vmem:[%s4 + $0x18] sm:$0xff]
    %v197 = vld [vmem:[%s4 + $0x20] sm:$0xff]
    %v198 = vld [vmem:[%s4 + $0x28] sm:$0xff]
    %v199 = vld [vmem:[%s4 + $0x30] sm:$0xff]
    %v200 = vld [vmem:[%s4 + $0x38] sm:$0xff]
    %v201 = vld [vmem:[%s4 + $0x40] sm:$0xff]
    %v202 = vld [vmem:[%s4 + $0x48] sm:$0xff]
    %v203 = vld [vmem:[%s4 + $0x50] sm:$0xff]
    %v204 = vld [vmem:[%s4 + $0x58] sm:$0xff]
    %v205 = vld [vmem:[%s4 + $0x60] sm:$0xff]
    %v206 = vld [vmem:[%s4 + $0x68] sm:$0xff]
    %v207 = vld [vmem:[%s4 + $0x70] sm:$0xff]
    %v208 = vld [vmem:[%s4 + $0x78] sm:$0xff]
    %v209 = vld [vmem:[%s4 + $0x80] sm:$0xff]
    %v210 = vld [vmem:[%s4 + $0x88] sm:$0xff]
    %v211 = vld [vmem:[%s4 + $0x90] sm:$0xff]
    %v212 = vld [vmem:[%s5] sm:$0x1]
    %v214 = vlaneseq
    %v215 = vshrl.u32 %v214, 7
    %v216 = vsub.s32 0, %v215
    %v217 = vrot.slane %v212, %v216
    %vm219 = vcmask 195584
    %v221 = vsel %vm219, %v192, 0
    %223 = vmatprep.subr.mxu0 0.0
    %224 = vmatpush1.msra.mxu0 %v193
    %225 = vmatprep.subr.mxu0 0.0
    %226 = vmatpush1.msra.mxu0 %v194
    %227 = vmatprep.subr.mxu0 0.0
    %228 = vmatpush1.msra.mxu0 %v195
    %229 = vmatprep.subr.mxu0 0.0
    %230 = vmatpush1.msra.mxu0 %v196
    %231 = vmatprep.subr.mxu0 0.0
    %232 = vmatpush1.msra.mxu0 %v197
    %233 = vmatprep.subr.mxu0 0.0
    %234 = vmatpush1.msra.mxu0 %v198
    %235 = vmatprep.subr.mxu0 0.0
    %236 = vmatpush1.msra.mxu0 %v199
    %237 = vmatprep.subr.mxu0 0.0
    %238 = vmatpush1.msra.mxu0 %v200
    %239 = vmatprep.subr.mxu0 0.0
    %240 = vmatpush1.msra.mxu0 %v201
    %241 = vmatprep.subr.mxu0 0.0
    %242 = vmatpush1.msra.mxu0 %v202
    %243 = vmatprep.subr.mxu0 0.0
    %244 = vmatpush1.msra.mxu0 %v203
    %245 = vmatprep.subr.mxu0 0.0
    %246 = vmatpush1.msra.mxu0 %v204
    %247 = vmatprep.subr.mxu0 0.0
    %248 = vmatpush1.msra.mxu0 %v205
    %249 = vmatprep.subr.mxu0 0.0
    %250 = vmatpush1.msra.mxu0 %v206
    %251 = vmatprep.subr.mxu0 0.0
    %252 = vmatpush1.msra.mxu0 %v207
    %253 = vmatprep.subr.mxu0 0.0
    %254 = vmatpush1.msra.mxu0 %v208
    %255 = vmatprep.subr.mxu0 0.0
    %256 = vmatpush1.msra.mxu0 %v209
    %257 = vmatprep.subr.mxu0 0.0
    %258 = vmatpush1.msra.mxu0 %v210
    %259 = vmatprep.subr.mxu0 0.0
    %260 = vmatpush1.msra.mxu0 %v211
    %261 = vmatprep.subr.mxu0 0.0
    %262 = vmatpush1.msra.mxu0 0.0
    %263 = vmatprep.subr.mxu0 0.0
    %264 = vmatpush1.msra.mxu0 0.0
    %265 = vmatprep.subr.mxu0 0.0
    %266 = vmatpush1.msra.mxu0 0.0
    %267 = vmatprep.subr.mxu0 0.0
    %268 = vmatpush1.msra.mxu0 0.0
    %269 = vmatprep.subr.mxu0 0.0
    %270 = vmatpush1.msra.mxu0 0.0
    %271 = vmatprep.subr.mxu0 0.0
    %272 = vmatpush1.msra.mxu0 0.0
    %273 = vmatprep.subr.mxu0 0.0
    %274 = vmatpush1.msra.mxu0 0.0
    %275 = vmatprep.subr.mxu0 0.0
    %276 = vmatpush1.msra.mxu0 0.0
    %277 = vmatprep.subr.mxu0 0.0
    %278 = vmatpush1.msra.mxu0 0.0
    %279 = vmatprep.subr.mxu0 0.0
    %280 = vmatpush1.msra.mxu0 0.0
    %281 = vmatprep.subr.mxu0 0.0
    %282 = vmatpush1.msra.mxu0 0.0
    %283 = vmatprep.subr.mxu0 0.0
    %284 = vmatpush1.msra.mxu0 0.0
    %285 = vmatprep.subr.mxu0 0.0
    %286 = vmatpush1.msra.mxu0 0.0
    %287 = vmatprep.mubr.f32.mxu0 %v221
    %288 = vmatmul.mubr.f32.gmra.mrb[0].mxu0 %v191
    %v289 = vpop.f32.mrb[0].mxu0
    %v290 = vadd.f32 %v217, %v289
    %v291 = vpop.f32.mrb[0].mxu0
    %292 = vdwg.mxu0
    %v293 = vmax.f32 %v290, 0.0
    %v294 = vld [vmem:[%s6] sm:$0x1]
    %v296 = vlaneseq
    %v297 = vshrl.u32 %v296, 7
    %v298 = vsub.s32 0, %v297
    %v299 = vrot.slane %v294, %v298
    %v301 = vmul.f32 %v293, %v299
    %vm302 = vcmask 801792
    %v303 = vsel %vm302, %v301, 0.0
    %304 = vadd.xlane.f32.xlu0 %v303
    %v305 = vpop.xlane.xlu0 %304
    %v306 = vld [vmem:[%s1] sm:$0xff]
    %v307 = vld [vmem:[%s7] sm:$0x1]
    %v309 = vlaneseq
    %v310 = vshrl.u32 %v309, 7
    %v311 = vsub.s32 0, %v310
    %v312 = vrot.slane %v307, %v311
    %v314 = vmul.f32 %v306, %v312
    %vm315 = vcmask 277504
    %v316 = vsel %vm315, %v314, 0.0
    %317 = vadd.xlane.f32.xlu0 %v316
    %v318 = vpop.xlane.xlu0 %317
    %v319 = vadd.f32 %v305, %v318
    %v320 = vld [vmem:[#allocation2] sm:$0x1]
    %v322 = vlaneseq
    %v323 = vshrl.u32 %v322, 7
    %v324 = vsub.s32 0, %v323
    %v325 = vrot.slane %v320, %v324
    %v327 = vadd.f32 %v319, %v325
    %vm328 = vcmask 7168
    %329 = vst.msk [vmem:[#allocation3] sm:$0xff] %vm328, %v327
    // Predicated region
    $region38: #{model_cnn_feature_forward.1} parent=1 // pred_check
      _
    $region39: #{model_cnn_feature_forward.1} parent=1 // pred_check_branch
      %331 = sbr.rel (0) target = $region41
    $region40: #{model_cnn_feature_forward.1} parent=1 // pred_region
      // Predicated region
      $region42: #{model_cnn_feature_forward.1} parent=40 // pred_check
        _
      $region43: #{model_cnn_feature_forward.1} parent=40 // pred_check_branch
        %333 = sbr.rel (0) target = $region45
      $region44: #{model_cnn_feature_forward.1} parent=40 // pred_region
        // Predicated region
        $region46: #{model_cnn_feature_forward.1} parent=44 // pred_check
          _
        $region47: #{model_cnn_feature_forward.1} parent=44 // pred_check_branch
          %335 = sbr.rel target = $region49
        $region48: #{model_cnn_feature_forward.1} parent=44 // pred_region
          // Predicated region
          $region61: #{model_cnn_feature_forward.1} parent=48 // pred_check
            _
          $region62: #{model_cnn_feature_forward.1} parent=48 // pred_check_branch
            %350 = sbr.rel (0) target = $region64
          $region63: #{model_cnn_feature_forward.1} parent=48 // pred_region
            loop: start=0, step=1, limit=1
            $region65: #{model_cnn_feature_forward.1} parent=63 // loop_pre_header
              _
            $region66: #{model_cnn_feature_forward.1} parent=63 // loop_header
              %s353 = sphi 0, %s357
              %p354 = scmp.ge.s32.totalorder %s353, 1
              %s358 = sphi [#allocation3], [#allocation3]
              %s359 = sphi %s9, %s9
            $region67: #{model_cnn_feature_forward.1} parent=63 // loop_header_branch
              %356 = sbr.rel (%p354) target = $region71
            $region68: #{model_cnn_feature_forward.1} parent=63 // loop_body
              %v360 = vld [vmem:[%s358] sm:$0x3]
              %361 = vst [vmem:[%s359] sm:$0x3] %v360
            $region69: #{model_cnn_feature_forward.1} parent=63 // loop_footer
              %s357 = sadd.s32 1, %s353
            $region70: #{model_cnn_feature_forward.1} parent=63 // loop_footer_branch
              %352 = sbr.rel target = $region66
            $region71: #{model_cnn_feature_forward.1} parent=63 // loop_exit
              _
          $region64: #{model_cnn_feature_forward.1} parent=48 // pred_fallthru
            _
        $region49: #{model_cnn_feature_forward.1} parent=44 // pred_fallthru
          _
        // Predicated region
        $region50: #{model_cnn_feature_forward.1} parent=44 // pred_check
          _
        $region51: #{model_cnn_feature_forward.1} parent=44 // pred_check_branch
          %337 = sbr.rel (0) target = $region53
        $region52: #{model_cnn_feature_forward.1} parent=44 // pred_region
          loop: start=0, step=1, limit=1
          $region54: #{model_cnn_feature_forward.1} parent=52 // loop_pre_header
            _
          $region55: #{model_cnn_feature_forward.1} parent=52 // loop_header
            %s340 = sphi 0, %s344
            %p341 = scmp.ge.s32.totalorder %s340, 1
            %s345 = sphi [#allocation3], [#allocation3]
            %s346 = sphi %s9, %s9
          $region56: #{model_cnn_feature_forward.1} parent=52 // loop_header_branch
            %343 = sbr.rel (%p341) target = $region60
          $region57: #{model_cnn_feature_forward.1} parent=52 // loop_body
            %v347 = vld [vmem:[%s345] sm:$0x3]
            %348 = vst [vmem:[%s346] sm:$0x3] %v347
          $region58: #{model_cnn_feature_forward.1} parent=52 // loop_footer
            %s344 = sadd.s32 1, %s340
          $region59: #{model_cnn_feature_forward.1} parent=52 // loop_footer_branch
            %339 = sbr.rel target = $region55
          $region60: #{model_cnn_feature_forward.1} parent=52 // loop_exit
            _
        $region53: #{model_cnn_feature_forward.1} parent=44 // pred_fallthru
          _
      $region45: #{model_cnn_feature_forward.1} parent=40 // pred_fallthru
        _
      %362 = vnop
    $region41: #{model_cnn_feature_forward.1} parent=1 // pred_fallthru
      _
    // Predicated region
    $region72: #{model_cnn_feature_forward.1} parent=1 // pred_check
      _
    $region73: #{model_cnn_feature_forward.1} parent=1 // pred_check_branch
      %364 = sbr.rel (0) target = $region75
    $region74: #{model_cnn_feature_forward.1} parent=1 // pred_region
      _
    $region75: #{model_cnn_feature_forward.1} parent=1 // pred_fallthru
      _

</llo_original>
